<compile_context>
chip_gen: v5e
topology: v5e:2x2
jax: 0.10.0
libtpu: 0.0.40
codegen_flags: <defaults>
</compile_context>

<pallas_src>
import jax
import jax.numpy as jnp
from jax.experimental import pallas as pl
from jax.experimental.pallas import tpu as pltpu


# ----------------------------------------------------------------------------
# Single fused kernel: L x (linear + ReLU) followed by LayerNorm epilogue.
# Invoked once per stream via the grid=(2,) axis.
# ----------------------------------------------------------------------------
def encoder_fused_kernel(x_ref, w_ref, b_ref, g_ref, beta_ref, o_ref):
    # x_ref: [Nmax, C]   w_ref: [L, C, C]   b_ref: [L, 1, C]
    # g_ref/beta_ref: [1, C]                o_ref: [Nmax, C]
    x = x_ref[...]                                   # f32
    num_layers = w_ref.shape[0]                      # static (L = 2) -> unrolled
    for layer in range(num_layers):
        y = jnp.dot(x, w_ref[layer], preferred_element_type=jnp.float32)
        y = y + b_ref[layer]                         # broadcast over rows
        x = jnp.maximum(y, 0.0)                      # ReLU (Encoder.activation)

    # final shared LayerNorm over channels (torch default eps = 1e-5), f32 math
    mean = jnp.mean(x, axis=-1, keepdims=True)
    cen = x - mean
    var = jnp.mean(cen * cen, axis=-1, keepdims=True)
    inv = jax.lax.rsqrt(var + 1e-5)
    o_ref[...] = cen * inv * g_ref[...] + beta_ref[...]


# ----------------------------------------------------------------------------
# Parameters: stacked per-stream, per-layer weights (uniform hidden width).
# ----------------------------------------------------------------------------
def make_encoder_params(key, channels):
    """Deterministic init. Stacking layers into one tensor requires a uniform
    hidden width, which holds for args.encoder_channels = "32,32,32"."""
    c = channels[0]
    assert all(ch == c for ch in channels), "fused kernel assumes uniform channels"
    num_layers = len(channels) - 1
    scale = 1.0 / jnp.sqrt(jnp.float32(c))

    wv, bv, wc, bc = [], [], [], []
    for _ in range(num_layers):
        key, k1, k2, k3, k4 = jax.random.split(key, 5)
        wv.append(jax.random.normal(k1, (c, c), jnp.float32) * scale)
        bv.append(jax.random.normal(k2, (1, c), jnp.float32) * 0.01)
        wc.append(jax.random.normal(k3, (c, c), jnp.float32) * scale)
        bc.append(jax.random.normal(k4, (1, c), jnp.float32) * 0.01)

    return {
        "w": jnp.stack([jnp.stack(wv), jnp.stack(wc)], axis=0),  # [2, L, C, C]
        "b": jnp.stack([jnp.stack(bv), jnp.stack(bc)], axis=0),  # [2, L, 1, C]
        "ln_gamma": jnp.ones((1, c), jnp.float32),               # torch LayerNorm init
        "ln_beta": jnp.zeros((1, c), jnp.float32),
    }


# ----------------------------------------------------------------------------
# Encoder forward: one pallas_call for the entire forward (both streams).
# ----------------------------------------------------------------------------
def encoder_forward(params, xv, xc):
    nv, c = xv.shape
    nc_, _ = xc.shape
    nmax = max(nv, nc_)

    # pack the two node streams into a single [2, Nmax, C] slab (zero-pad shorter
    # stream; padded rows are computed and discarded — negligible at these sizes)
    xv_p = jnp.pad(xv, ((0, nmax - nv), (0, 0)))
    xc_p = jnp.pad(xc, ((0, nmax - nc_), (0, 0)))
    x = jnp.stack([xv_p, xc_p], axis=0)

    w = params["w"]                  # [2, L, C, C]
    b = params["b"]                  # [2, L, 1, C]
    num_layers = w.shape[1]

    out = pl.pallas_call(
        encoder_fused_kernel,
        out_shape=jax.ShapeDtypeStruct((2, nmax, c), jnp.float32),
        grid=(2,),                                   # stream axis: 0 = var, 1 = cls
        in_specs=[
            pl.BlockSpec((None, nmax, c), lambda s: (s, 0, 0)),
            pl.BlockSpec((None, num_layers, c, c), lambda s: (s, 0, 0, 0)),
            pl.BlockSpec((None, num_layers, 1, c), lambda s: (s, 0, 0, 0)),
            pl.BlockSpec((1, c), lambda s: (0, 0)),  # shared LayerNorm gamma
            pl.BlockSpec((1, c), lambda s: (0, 0)),  # shared LayerNorm beta
        ],
        out_specs=pl.BlockSpec((None, nmax, c), lambda s: (s, 0, 0)),
        compiler_params=pltpu.CompilerParams(
            dimension_semantics=("parallel",)),      # v7x: one stream per TensorCore
    )(x, w, b, params["ln_gamma"], params["ln_beta"])

    return out[0, :nv], out[1, :nc_]


if __name__ == "__main__":
    # args.encoder_channels = "32,32,32" -> two EncoderLayers, hidden = 32
    channels = [32, 32, 32]
    n_var, n_cls = 16, 8        # number of variable / clause nodes

    key = jax.random.PRNGKey(0)
    key, kv, kc, kp = jax.random.split(key, 4)
    xv = jax.random.normal(kv, (n_var, channels[0]), jnp.float32)
    xc = jax.random.normal(kc, (n_cls, channels[0]), jnp.float32)

    params = make_encoder_params(kp, channels)

    out_xv, out_xc = encoder_forward(params, xv, xc)
    jax.block_until_ready((out_xv, out_xc))

    assert out_xv.shape == (n_var, channels[-1])
    assert out_xc.shape == (n_cls, channels[-1])
    assert jnp.all(jnp.isfinite(out_xv)) and jnp.all(jnp.isfinite(out_xc))

    print("KERNEL_OK")
</pallas_src>

<mosaic_0001>
module attributes {stable_mosaic.version = 11 : i64} {
  func.func @encoder_fused_kernel(%arg0: i32, %arg1: memref<1x16x32xf32, #tpu.memory_space<vmem>>, %arg2: memref<1x2x32x32xf32, #tpu.memory_space<vmem>>, %arg3: memref<1x2x1x32xf32, #tpu.memory_space<vmem>>, %arg4: memref<1x32xf32, #tpu.memory_space<vmem>>, %arg5: memref<1x32xf32, #tpu.memory_space<vmem>>, %arg6: memref<1x16x32xf32, #tpu.memory_space<vmem>>) attributes {dimension_semantics = [#tpu.dimension_semantics<parallel>], iteration_bounds = array<i64: 2>, scalar_prefetch = 0 : i64, scratch_operands = 0 : i64, tpu.core_type = #tpu.core_type<tc>, window_params = [{transform_indices = @transform_0, window_bounds = array<i64: 1, 16, 32>}, {transform_indices = @transform_1, window_bounds = array<i64: 1, 2, 32, 32>}, {transform_indices = @transform_2, window_bounds = array<i64: 1, 2, 1, 32>}, {pipeline_mode = #tpu.pipeline_mode<synchronous>, transform_indices = @transform_3, window_bounds = array<i64: 1, 32>}, {pipeline_mode = #tpu.pipeline_mode<synchronous>, transform_indices = @transform_4, window_bounds = array<i64: 1, 32>}, {transform_indices = @transform_5, window_bounds = array<i64: 1, 16, 32>}]} {
    %c0 = arith.constant 0 : index
    %c0_0 = arith.constant 0 : index
    %c0_1 = arith.constant 0 : index
    %0 = vector.load %arg1[%c0, %c0_0, %c0_1] : memref<1x16x32xf32, #tpu.memory_space<vmem>>, vector<1x16x32xf32>
    %1 = vector.shape_cast %0 : vector<1x16x32xf32> to vector<16x32xf32>
    %c0_2 = arith.constant 0 : index
    %c0_3 = arith.constant 0 : index
    %c0_4 = arith.constant 0 : index
    %c0_5 = arith.constant 0 : index
    %2 = vector.load %arg2[%c0_2, %c0_3, %c0_4, %c0_5] : memref<1x2x32x32xf32, #tpu.memory_space<vmem>>, vector<1x1x32x32xf32>
    %3 = vector.shape_cast %2 : vector<1x1x32x32xf32> to vector<32x32xf32>
    %cst = arith.constant dense<0.000000e+00> : vector<16x32xf32>
    %4 = tpu.matmul %1, %3, %cst {dimension_numbers = #tpu.dot_dimension_numbers<[1], [0], [0], [1], [0, 0, 1, 1], [], []>} : vector<16x32xf32>, vector<32x32xf32>, vector<16x32xf32> -> vector<16x32xf32>
    %c0_6 = arith.constant 0 : index
    %c0_7 = arith.constant 0 : index
    %c0_8 = arith.constant 0 : index
    %c0_9 = arith.constant 0 : index
    %5 = vector.load %arg3[%c0_6, %c0_7, %c0_8, %c0_9] : memref<1x2x1x32xf32, #tpu.memory_space<vmem>>, vector<1x1x1x32xf32>
    %6 = vector.shape_cast %5 : vector<1x1x1x32xf32> to vector<1x32xf32>
    %7 = vector.broadcast %6 : vector<1x32xf32> to vector<16x32xf32>
    %8 = arith.addf %4, %7 : vector<16x32xf32>
    %cst_10 = arith.constant 0.000000e+00 : f32
    %9 = vector.broadcast %cst_10 : f32 to vector<16x32xf32>
    %10 = arith.maximumf %8, %9 : vector<16x32xf32>
    %c0_11 = arith.constant 0 : index
    %c1 = arith.constant 1 : index
    %c0_12 = arith.constant 0 : index
    %c0_13 = arith.constant 0 : index
    %11 = vector.load %arg2[%c0_11, %c1, %c0_12, %c0_13] : memref<1x2x32x32xf32, #tpu.memory_space<vmem>>, vector<1x1x32x32xf32>
    %12 = vector.shape_cast %11 : vector<1x1x32x32xf32> to vector<32x32xf32>
    %cst_14 = arith.constant dense<0.000000e+00> : vector<16x32xf32>
    %13 = tpu.matmul %10, %12, %cst_14 {dimension_numbers = #tpu.dot_dimension_numbers<[1], [0], [0], [1], [0, 0, 1, 1], [], []>} : vector<16x32xf32>, vector<32x32xf32>, vector<16x32xf32> -> vector<16x32xf32>
    %c0_15 = arith.constant 0 : index
    %c1_16 = arith.constant 1 : index
    %c0_17 = arith.constant 0 : index
    %c0_18 = arith.constant 0 : index
    %14 = vector.load %arg3[%c0_15, %c1_16, %c0_17, %c0_18] : memref<1x2x1x32xf32, #tpu.memory_space<vmem>>, vector<1x1x1x32xf32>
    %15 = vector.shape_cast %14 : vector<1x1x1x32xf32> to vector<1x32xf32>
    %16 = vector.broadcast %15 : vector<1x32xf32> to vector<16x32xf32>
    %17 = arith.addf %13, %16 : vector<16x32xf32>
    %cst_19 = arith.constant 0.000000e+00 : f32
    %18 = vector.broadcast %cst_19 : f32 to vector<16x32xf32>
    %19 = arith.maximumf %17, %18 : vector<16x32xf32>
    %cst_20 = arith.constant dense<0.000000e+00> : vector<16xf32>
    %20 = vector.multi_reduction <add>, %19, %cst_20 [1] : vector<16x32xf32> to vector<16xf32>
    %21 = vector.shape_cast %20 : vector<16xf32> to vector<16x1xf32>
    %cst_21 = arith.constant 3.200000e+01 : f32
    %22 = vector.broadcast %cst_21 : f32 to vector<16x1xf32>
    %23 = arith.divf %21, %22 : vector<16x1xf32>
    %24 = vector.broadcast %23 : vector<16x1xf32> to vector<16x32xf32>
    %25 = arith.subf %19, %24 : vector<16x32xf32>
    %26 = arith.mulf %25, %25 : vector<16x32xf32>
    %cst_22 = arith.constant dense<0.000000e+00> : vector<16xf32>
    %27 = vector.multi_reduction <add>, %26, %cst_22 [1] : vector<16x32xf32> to vector<16xf32>
    %28 = vector.shape_cast %27 : vector<16xf32> to vector<16x1xf32>
    %cst_23 = arith.constant 3.200000e+01 : f32
    %29 = vector.broadcast %cst_23 : f32 to vector<16x1xf32>
    %30 = arith.divf %28, %29 : vector<16x1xf32>
    %cst_24 = arith.constant 9.99999974E-6 : f32
    %31 = vector.broadcast %cst_24 : f32 to vector<16x1xf32>
    %32 = arith.addf %30, %31 : vector<16x1xf32>
    %33 = math.rsqrt %32 : vector<16x1xf32>
    %34 = vector.broadcast %33 : vector<16x1xf32> to vector<16x32xf32>
    %35 = arith.mulf %25, %34 : vector<16x32xf32>
    %c0_25 = arith.constant 0 : index
    %c0_26 = arith.constant 0 : index
    %36 = vector.load %arg4[%c0_25, %c0_26] : memref<1x32xf32, #tpu.memory_space<vmem>>, vector<1x32xf32>
    %37 = vector.broadcast %36 : vector<1x32xf32> to vector<16x32xf32>
    %38 = arith.mulf %35, %37 : vector<16x32xf32>
    %c0_27 = arith.constant 0 : index
    %c0_28 = arith.constant 0 : index
    %39 = vector.load %arg5[%c0_27, %c0_28] : memref<1x32xf32, #tpu.memory_space<vmem>>, vector<1x32xf32>
    %40 = vector.broadcast %39 : vector<1x32xf32> to vector<16x32xf32>
    %41 = arith.addf %38, %40 : vector<16x32xf32>
    %c0_29 = arith.constant 0 : index
    %c0_30 = arith.constant 0 : index
    %c0_31 = arith.constant 0 : index
    %42 = vector.load %arg6[%c0_29, %c0_30, %c0_31] : memref<1x16x32xf32, #tpu.memory_space<vmem>>, vector<1x16x32xf32>
    %43 = vector.shape_cast %42 : vector<1x16x32xf32> to vector<16x32xf32>
    %44 = vector.shape_cast %41 : vector<16x32xf32> to vector<1x16x32xf32>
    tpu.vector_store %arg6[%c0_29, %c0_30, %c0_31], %44 {strides = array<i32>} : memref<1x16x32xf32, #tpu.memory_space<vmem>>, vector<1x16x32xf32>,
    return
  }
  func.func @transform_0(%arg0: i32) -> (i32, i32, i32) {
    %c0_i32 = arith.constant 0 : i32
    %c0_i32_0 = arith.constant 0 : i32
    %c0_i32_1 = arith.constant 0 : i32
    return %arg0, %c0_i32, %c0_i32_0 : i32, i32, i32
  }
  func.func @transform_1(%arg0: i32) -> (i32, i32, i32, i32) {
    %c0_i32 = arith.constant 0 : i32
    %c0_i32_0 = arith.constant 0 : i32
    %c0_i32_1 = arith.constant 0 : i32
    %c0_i32_2 = arith.constant 0 : i32
    return %arg0, %c0_i32, %c0_i32_0, %c0_i32_1 : i32, i32, i32, i32
  }
  func.func @transform_2(%arg0: i32) -> (i32, i32, i32, i32) {
    %c0_i32 = arith.constant 0 : i32
    %c0_i32_0 = arith.constant 0 : i32
    %c0_i32_1 = arith.constant 0 : i32
    %c0_i32_2 = arith.constant 0 : i32
    return %arg0, %c0_i32, %c0_i32_0, %c0_i32_1 : i32, i32, i32, i32
  }
  func.func @transform_3(%arg0: i32) -> (i32, i32) {
    %c0_i32 = arith.constant 0 : i32
    %c0_i32_0 = arith.constant 0 : i32
    %c0_i32_1 = arith.constant 0 : i32
    return %c0_i32, %c0_i32_0 : i32, i32
  }
  func.func @transform_4(%arg0: i32) -> (i32, i32) {
    %c0_i32 = arith.constant 0 : i32
    %c0_i32_0 = arith.constant 0 : i32
    %c0_i32_1 = arith.constant 0 : i32
    return %c0_i32, %c0_i32_0 : i32, i32
  }
  func.func @transform_5(%arg0: i32) -> (i32, i32, i32) {
    %c0_i32 = arith.constant 0 : i32
    %c0_i32_0 = arith.constant 0 : i32
    %c0_i32_1 = arith.constant 0 : i32
    return %arg0, %c0_i32, %c0_i32_0 : i32, i32, i32
  }
}

</mosaic_0001>

<llo_original>
// kernel: tpu_custom_call.1
$region0: #{tpu_custom_call.1}
  #allocation0 [shape = 'u32[]', space=smem, size = 0x4, offset = 0x4, fixed_abs, tag = 'smem constant byte address 0x4 - core index']
  #allocation1 [shape = 'u32[72,128]{1,0:T(1,128)}', space=vmem, size = 0x9000, scoped, tag = 'internal scratch']
  %s0 = inlined_call_operand.hbm [shape: f32[2,16,32], index: 0, kind: input, shape index: {}]
  %s1 = inlined_call_operand.hbm [shape: f32[2,2,32,32], index: 1, kind: input, shape index: {}]
  %s2 = inlined_call_operand.hbm [shape: f32[2,2,1,32], index: 2, kind: input, shape index: {}]
  %s3 = inlined_call_operand.vmem [shape: f32[1,32], index: 3, kind: input, shape index: {}]
  %s4 = inlined_call_operand.vmem [shape: f32[1,32], index: 4, kind: input, shape index: {}]
  %s5 = inlined_call_operand.hbm [shape: f32[2,16,32], index: 5, kind: output, shape index: {}]
  %s6 = sld [smem:[#allocation0]]
  $region65: #{tpu_custom_call.1} parent=0
    _
  %s8 = ssub.s32 1, %s6
  %s9 = scalar_select 0, %s8, %s6
  $region1: #{tpu_custom_call.1} parent=0
    #allocation2 [shape = 'u8[16384]{0}', space=vmem, size = 0x4000, scoped, tag = 'input window, operand 0']
    #allocation3 [shape = 's32[2]{0}', space=sflag, size = 0x8, scoped, tag = 'scoped memory for tpu_custom_call.1']
    #allocation4 [shape = 's32[2]{0}', space=sflag, size = 0x8, scoped, tag = 'scoped memory for tpu_custom_call.1']
    #allocation5 [shape = 'u8[65536]{0}', space=vmem, size = 0x10000, scoped, tag = 'input window, operand 1']
    #allocation6 [shape = 's32[2]{0}', space=sflag, size = 0x8, scoped, tag = 'scoped memory for tpu_custom_call.1']
    #allocation7 [shape = 'u8[2048]{0}', space=vmem, size = 0x800, scoped, tag = 'input window, operand 2']
    #allocation8 [shape = 'u8[16384]{0}', space=vmem, size = 0x4000, scoped, tag = 'output window, operand 0']
    %10 = vsyncpa [#allocation3], 0
    %s11 = scalar_lea.sflag [#allocation3], 1
    %12 = vsyncpa %s11, 0
    %13 = vsyncpa [#allocation6], 0
    %s14 = scalar_lea.sflag [#allocation6], 1
    %15 = vsyncpa %s14, 0
    %16 = vsyncpa [#allocation4], 0
    %s17 = scalar_lea.sflag [#allocation4], 1
    %18 = vsyncpa %s17, 0
    loop: start=0, step=1, limit=4
    $region2: #{tpu_custom_call.1} parent=1 // loop_pre_header
      _
    $region3: #{tpu_custom_call.1} parent=1 // loop_header
      %s20 = sphi 0, %s24
      %p21 = scmp.ge.s32.totalorder %s20, 4
      %s30 = sphi 0, %s32
      %s33 = sphi 0, %s30
      %s34 = sphi 0, %s33
      %s50 = sphi 0, %s34
      %s56 = sphi 0, %s58
      %s59 = sphi 0, %s56
      %s60 = sphi 0, %s59
      %s76 = sphi 0, %s60
      %s82 = sphi 0, %s84
      %s85 = sphi 0, %s82
      %s86 = sphi 0, %s85
      %s102 = sphi 0, %s86
      %s106 = sphi 0, %s106
      %s108 = sphi 0, %s106
      %s109 = sphi 0, %s108
      %s123 = sphi 0, %s109
      %s127 = sphi 0, %s127
      %s129 = sphi 0, %s127
      %s130 = sphi 0, %s129
      %s144 = sphi 0, %s130
      %s150 = sphi 0, %s152
      %s153 = sphi 0, %s150
      %s154 = sphi 0, %s153
      %s170 = sphi 0, %s154
    $region4: #{tpu_custom_call.1} parent=1 // loop_header_branch
      %23 = sbr.rel (%p21) target = $region8
    $region5: #{tpu_custom_call.1} parent=1 // loop_body
      %s25 = ssub.s32 %s20, 1
      %s26 = ssub.s32 %s20, 2
      %s27 = sadd.s32 %s20, 1
      %s28 = ssub.s32 %s20, %s27
      %p29 = scmp.eq.s32.totalorder %s28, 0
      %s31 = sadd.s32 %s30, 1
      %s32 = scalar_select %p29, %s30, %s31
      %p35 = pneg %p29
      %p36 = scmp.eq.s32.totalorder %s20, 1
      %p37 = por %p35, %p36
      %p38 = scmp.ne.s32.totalorder %s30, %s33
      %p39 = scmp.eq.s32.totalorder %s20, 0
      %p40 = por %p38, %p39
      %p41 = scmp.ne.s32.totalorder %s30, %s33
      %p42 = scmp.eq.s32.totalorder %s25, 1
      %p43 = por %p41, %p42
      %p44 = scmp.ne.s32.totalorder %s33, %s34
      %p45 = scmp.eq.s32.totalorder %s25, 0
      %p46 = por %p44, %p45
      %p47 = scmp.ne.s32.totalorder %s33, %s34
      %p48 = scmp.eq.s32.totalorder %s26, 1
      %p49 = por %p47, %p48
      %p51 = scmp.ne.s32.totalorder %s34, %s50
      %p52 = scmp.eq.s32.totalorder %s26, 0
      %p53 = por %p51, %p52
      %s54 = ssub.s32 %s20, %s27
      %p55 = scmp.eq.s32.totalorder %s54, 0
      %s57 = sadd.s32 %s56, 1
      %s58 = scalar_select %p55, %s56, %s57
      %p61 = pneg %p55
      %p62 = scmp.eq.s32.totalorder %s20, 1
      %p63 = por %p61, %p62
      %p64 = scmp.ne.s32.totalorder %s56, %s59
      %p65 = scmp.eq.s32.totalorder %s20, 0
      %p66 = por %p64, %p65
      %p67 = scmp.ne.s32.totalorder %s56, %s59
      %p68 = scmp.eq.s32.totalorder %s25, 1
      %p69 = por %p67, %p68
      %p70 = scmp.ne.s32.totalorder %s59, %s60
      %p71 = scmp.eq.s32.totalorder %s25, 0
      %p72 = por %p70, %p71
      %p73 = scmp.ne.s32.totalorder %s59, %s60
      %p74 = scmp.eq.s32.totalorder %s26, 1
      %p75 = por %p73, %p74
      %p77 = scmp.ne.s32.totalorder %s60, %s76
      %p78 = scmp.eq.s32.totalorder %s26, 0
      %p79 = por %p77, %p78
      %s80 = ssub.s32 %s20, %s27
      %p81 = scmp.eq.s32.totalorder %s80, 0
      %s83 = sadd.s32 %s82, 1
      %s84 = scalar_select %p81, %s82, %s83
      %p87 = pneg %p81
      %p88 = scmp.eq.s32.totalorder %s20, 1
      %p89 = por %p87, %p88
      %p90 = scmp.ne.s32.totalorder %s82, %s85
      %p91 = scmp.eq.s32.totalorder %s20, 0
      %p92 = por %p90, %p91
      %p93 = scmp.ne.s32.totalorder %s82, %s85
      %p94 = scmp.eq.s32.totalorder %s25, 1
      %p95 = por %p93, %p94
      %p96 = scmp.ne.s32.totalorder %s85, %s86
      %p97 = scmp.eq.s32.totalorder %s25, 0
      %p98 = por %p96, %p97
      %p99 = scmp.ne.s32.totalorder %s85, %s86
      %p100 = scmp.eq.s32.totalorder %s26, 1
      %p101 = por %p99, %p100
      %p103 = scmp.ne.s32.totalorder %s86, %s102
      %p104 = scmp.eq.s32.totalorder %s26, 0
      %p105 = por %p103, %p104
      %s107 = sadd.s32 %s106, 1
      %p110 = scmp.eq.s32.totalorder %s20, 1
      %p111 = scmp.ne.s32.totalorder %s106, %s108
      %p112 = scmp.eq.s32.totalorder %s20, 0
      %p113 = por %p111, %p112
      %p114 = scmp.ne.s32.totalorder %s106, %s108
      %p115 = scmp.eq.s32.totalorder %s25, 1
      %p116 = por %p114, %p115
      %p117 = scmp.ne.s32.totalorder %s108, %s109
      %p118 = scmp.eq.s32.totalorder %s25, 0
      %p119 = por %p117, %p118
      %p120 = scmp.ne.s32.totalorder %s108, %s109
      %p121 = scmp.eq.s32.totalorder %s26, 1
      %p122 = por %p120, %p121
      %p124 = scmp.ne.s32.totalorder %s109, %s123
      %p125 = scmp.eq.s32.totalorder %s26, 0
      %p126 = por %p124, %p125
      %s128 = sadd.s32 %s127, 1
      %p131 = scmp.eq.s32.totalorder %s20, 1
      %p132 = scmp.ne.s32.totalorder %s127, %s129
      %p133 = scmp.eq.s32.totalorder %s20, 0
      %p134 = por %p132, %p133
      %p135 = scmp.ne.s32.totalorder %s127, %s129
      %p136 = scmp.eq.s32.totalorder %s25, 1
      %p137 = por %p135, %p136
      %p138 = scmp.ne.s32.totalorder %s129, %s130
      %p139 = scmp.eq.s32.totalorder %s25, 0
      %p140 = por %p138, %p139
      %p141 = scmp.ne.s32.totalorder %s129, %s130
      %p142 = scmp.eq.s32.totalorder %s26, 1
      %p143 = por %p141, %p142
      %p145 = scmp.ne.s32.totalorder %s130, %s144
      %p146 = scmp.eq.s32.totalorder %s26, 0
      %p147 = por %p145, %p146
      %s148 = ssub.s32 %s20, %s27
      %p149 = scmp.eq.s32.totalorder %s148, 0
      %s151 = sadd.s32 %s150, 1
      %s152 = scalar_select %p149, %s150, %s151
      %p155 = pneg %p149
      %p156 = scmp.eq.s32.totalorder %s20, 1
      %p157 = por %p155, %p156
      %p158 = scmp.ne.s32.totalorder %s150, %s153
      %p159 = scmp.eq.s32.totalorder %s20, 0
      %p160 = por %p158, %p159
      %p161 = scmp.ne.s32.totalorder %s150, %s153
      %p162 = scmp.eq.s32.totalorder %s25, 1
      %p163 = por %p161, %p162
      %p164 = scmp.ne.s32.totalorder %s153, %s154
      %p165 = scmp.eq.s32.totalorder %s25, 0
      %p166 = por %p164, %p165
      %p167 = scmp.ne.s32.totalorder %s153, %s154
      %p168 = scmp.eq.s32.totalorder %s26, 1
      %p169 = por %p167, %p168
      %p171 = scmp.ne.s32.totalorder %s154, %s170
      %p172 = scmp.eq.s32.totalorder %s26, 0
      %p173 = por %p171, %p172
      %p174 = scmp.le.s32.totalorder 1, %s20
      %p175 = scmp.lt.s32.totalorder %s20, 3
      %p176 = pnand %p174, %p175
      %p177 = pneg %p176
      // Predicated region
      $region9: #{tpu_custom_call.1} parent=5 // pred_check
        _
      $region10: #{tpu_custom_call.1} parent=5 // pred_check_branch
        %179 = sbr.rel (%p176) target = $region12
      $region11: #{tpu_custom_call.1} parent=5 // pred_region
        %s180 = ssub.s32 %s20, 1
        // Predicated region
        $region13: #{tpu_custom_call.1} parent=11 // pred_check
          %p181 = pneg %p119
        $region14: #{tpu_custom_call.1} parent=11 // pred_check_branch
          %183 = sbr.rel (%p181) target = $region16
        $region15: #{tpu_custom_call.1} parent=11 // pred_region
          _
        $region16: #{tpu_custom_call.1} parent=11 // pred_fallthru
          _
        // Predicated region
        $region17: #{tpu_custom_call.1} parent=11 // pred_check
          %p184 = pneg %p140
        $region18: #{tpu_custom_call.1} parent=11 // pred_check_branch
          %186 = sbr.rel (%p184) target = $region20
        $region19: #{tpu_custom_call.1} parent=11 // pred_region
          _
        $region20: #{tpu_custom_call.1} parent=11 // pred_fallthru
          _
      $region12: #{tpu_custom_call.1} parent=5 // pred_fallthru
        _
      %p187 = scmp.lt.s32.totalorder %s20, 2
      // Predicated region
      $region21: #{tpu_custom_call.1} parent=5 // pred_check
        %p188 = pneg %p187
      $region22: #{tpu_custom_call.1} parent=5 // pred_check_branch
        %190 = sbr.rel (%p188) target = $region24
      $region23: #{tpu_custom_call.1} parent=5 // pred_region
        // Predicated region
        $region25: #{tpu_custom_call.1} parent=23 // pred_check
          %p191 = pneg %p40
        $region26: #{tpu_custom_call.1} parent=23 // pred_check_branch
          %193 = sbr.rel (%p191) target = $region28
        $region27: #{tpu_custom_call.1} parent=23 // pred_region
          %s194 = sand.u32 %s30, 1
          %s195 = scalar_lea.sflag [#allocation3], %s194
          %s196 = sand.u32 %s30, 1
          %s197 = smul.addr %s196, 16
          %s198 = scalar_lea.vmem [#allocation2], %s197
          %200 = vsyncadd %s195, 0
          %s201 = smul.addr %s20, 2
          %s202 = smul.addr %s201, 8
          %s203 = scalar_lea.hbm %s0, %s202
          %s204 = sshll.u32 %s203, 4
          %s205 = int_to_ptr.hbm [resolvable:$true] %s204
          %s206 = sshll.u32 %s198, 4
          %s207 = int_to_ptr.vmem [resolvable:$true] %s206
          %212 = dma.hbm_to_vmem [thread:$0]  %s205, 256, %s207, %s195, 128, 128, 8
        $region28: #{tpu_custom_call.1} parent=23 // pred_fallthru
          _
        // Predicated region
        $region29: #{tpu_custom_call.1} parent=23 // pred_check
          %p213 = pneg %p66
        $region30: #{tpu_custom_call.1} parent=23 // pred_check_branch
          %215 = sbr.rel (%p213) target = $region32
        $region31: #{tpu_custom_call.1} parent=23 // pred_region
          %s216 = sand.u32 %s20, 1
          %s217 = scalar_lea.sflag [#allocation6], %s216
          %s218 = sand.u32 %s56, 1
          %s219 = smul.addr %s218, 64
          %s220 = scalar_lea.vmem [#allocation5], %s219
          %222 = vsyncadd %s217, 0
          %s223 = smul.addr %s20, 8
          %s224 = smul.addr %s223, 8
          %s225 = scalar_lea.hbm %s1, %s224
          %s226 = sshll.u32 %s225, 4
          %s227 = int_to_ptr.hbm [resolvable:$true] %s226
          %s228 = sshll.u32 %s220, 4
          %s229 = int_to_ptr.vmem [resolvable:$true] %s228
          %234 = dma.hbm_to_vmem [thread:$0]  %s227, 1024, %s229, %s217, 128, 128, 8
        $region32: #{tpu_custom_call.1} parent=23 // pred_fallthru
          _
        // Predicated region
        $region33: #{tpu_custom_call.1} parent=23 // pred_check
          %p235 = pneg %p92
        $region34: #{tpu_custom_call.1} parent=23 // pred_check_branch
          %237 = sbr.rel (%p235) target = $region36
        $region35: #{tpu_custom_call.1} parent=23 // pred_region
          %s238 = sand.u32 %s20, 1
          %s239 = scalar_lea.sflag [#allocation6], %s238
          %s240 = sand.u32 %s82, 1
          %s241 = smul.addr %s240, 2
          %s242 = scalar_lea.vmem [#allocation7], %s241
          %244 = vsyncadd %s239, 0
          %s245 = smul.addr %s20, 2
          %s246 = scalar_lea.hbm %s2, %s245
          %s247 = sshll.u32 %s246, 4
          %s248 = int_to_ptr.hbm [resolvable:$true] %s247
          %s249 = sshll.u32 %s242, 4
          %s250 = int_to_ptr.vmem [resolvable:$true] %s249
          %255 = dma.hbm_to_vmem [thread:$0]  %s248, 32, %s250, %s239, 16, 16, 1
        $region36: #{tpu_custom_call.1} parent=23 // pred_fallthru
          _
      $region24: #{tpu_custom_call.1} parent=5 // pred_fallthru
        _
      %p256 = scmp.le.s32.totalorder 1, %s20
      %p257 = scmp.lt.s32.totalorder %s20, 3
      %p258 = pnand %p256, %p257
      %p259 = pneg %p258
      // Predicated region
      $region37: #{tpu_custom_call.1} parent=5 // pred_check
        _
      $region38: #{tpu_custom_call.1} parent=5 // pred_check_branch
        %261 = sbr.rel (%p258) target = $region40
      $region39: #{tpu_custom_call.1} parent=5 // pred_region
        %s262 = ssub.s32 %s20, 1
        %s263 = sand.u32 %s33, 1
        %s264 = scalar_lea.sflag [#allocation3], %s263
        %s265 = sand.u32 %s33, 1
        %s266 = smul.addr %s265, 16
        %s267 = scalar_lea.vmem [#allocation2], %s266
        // Predicated region
        $region41: #{tpu_custom_call.1} parent=39 // pred_check
          %p268 = pneg %p46
        $region42: #{tpu_custom_call.1} parent=39 // pred_check_branch
          %270 = sbr.rel (%p268) target = $region44
        $region43: #{tpu_custom_call.1} parent=39 // pred_region
          %272 = dma.done %s264, 256
        $region44: #{tpu_custom_call.1} parent=39 // pred_fallthru
          _
        %s273 = sand.u32 %s25, 1
        %s274 = scalar_lea.sflag [#allocation6], %s273
        %s275 = sand.u32 %s59, 1
        %s276 = smul.addr %s275, 64
        %s277 = scalar_lea.vmem [#allocation5], %s276
        // Predicated region
        $region45: #{tpu_custom_call.1} parent=39 // pred_check
          %p278 = pneg %p72
        $region46: #{tpu_custom_call.1} parent=39 // pred_check_branch
          %280 = sbr.rel (%p278) target = $region48
        $region47: #{tpu_custom_call.1} parent=39 // pred_region
          %282 = dma.done %s274, 1024
        $region48: #{tpu_custom_call.1} parent=39 // pred_fallthru
          _
        %s283 = sand.u32 %s25, 1
        %s284 = scalar_lea.sflag [#allocation6], %s283
        %s285 = sand.u32 %s85, 1
        %s286 = smul.addr %s285, 2
        %s287 = scalar_lea.vmem [#allocation7], %s286
        // Predicated region
        $region49: #{tpu_custom_call.1} parent=39 // pred_check
          %p288 = pneg %p98
        $region50: #{tpu_custom_call.1} parent=39 // pred_check_branch
          %290 = sbr.rel (%p288) target = $region52
        $region51: #{tpu_custom_call.1} parent=39 // pred_region
          %292 = dma.done %s284, 32
        $region52: #{tpu_custom_call.1} parent=39 // pred_fallthru
          _
        %s293 = sand.u32 %s33, 1
        %s294 = scalar_lea.sflag [#allocation3], %s293
        %s295 = sand.u32 %s33, 1
        %s296 = smul.addr %s295, 16
        %s297 = scalar_lea.vmem [#allocation2], %s296
        %p298 = pneg %p46
        %p299 = pneg %p43
        %s300 = sand.u32 %s25, 1
        %s301 = scalar_lea.sflag [#allocation6], %s300
        %s302 = sand.u32 %s59, 1
        %s303 = smul.addr %s302, 64
        %s304 = scalar_lea.vmem [#allocation5], %s303
        %p305 = pneg %p72
        %p306 = pneg %p69
        %s307 = sand.u32 %s25, 1
        %s308 = scalar_lea.sflag [#allocation6], %s307
        %s309 = sand.u32 %s85, 1
        %s310 = smul.addr %s309, 2
        %s311 = scalar_lea.vmem [#allocation7], %s310
        %p312 = pneg %p98
        %p313 = pneg %p95
        %p314 = pneg %p119
        %p315 = pneg %p116
        %p316 = pneg %p140
        %p317 = pneg %p137
        %p318 = pneg %p166
        %p319 = pneg %p163
        %s320 = sand.u32 %s153, 1
        %s321 = scalar_lea.sflag [#allocation4], %s320
        %s322 = sand.u32 %s153, 1
        %s323 = smul.addr %s322, 16
        %s324 = scalar_lea.vmem [#allocation8], %s323
        %v325 = vld [vmem:[%s267] sm:$0xff]
        %v326 = vld [vmem:[%s267 + $0x8] sm:$0xff]
        %v327 = vld [vmem:[%s277] sm:$0xff]
        %v328 = vld [vmem:[%s277 + $0x8] sm:$0xff]
        %v329 = vld [vmem:[%s277 + $0x10] sm:$0xff]
        %v330 = vld [vmem:[%s277 + $0x18] sm:$0xff]
        %v331 = vld [vmem:[%s287] sm:$0x1]
        %v333 = vperm.slane %v331, 0
        %vm335 = vcmask 261120
        %v337 = vsel %vm335, %v325, 0
        %v340 = vsel %vm335, %v326, 0
        %342 = vmatpush.msra.mxu0 0.0
        %343 = vmatpush.msra.mxu0 0.0
        %344 = vmatpush.msra.mxu0 0.0
        %345 = vmatpush.msra.mxu0 0.0
        %346 = vmatpush.msra.mxu0 0.0
        %347 = vmatpush.msra.mxu0 0.0
        %348 = vmatpush.msra.mxu0 0.0
        %349 = vmatpush.msra.mxu0 0.0
        %350 = vmatpush.msra.mxu0 0.0
        %351 = vmatpush.msra.mxu0 0.0
        %352 = vmatpush.msra.mxu0 0.0
        %353 = vmatpush.msra.mxu0 0.0
        %354 = vmatpush.msra.mxu0 %v330
        %355 = vmatpush.msra.mxu0 %v329
        %356 = vmatpush.msra.mxu0 %v328
        %357 = vmatpush.msra.mxu0 %v327
        %358 = vmatmul.f32.gmra.mxu0 %v337
        %v359 = vpop.f32.mrf.mxu0
        %v360 = vadd.f32 %v333, %v359
        %361 = vmatmul.f32.gmra.mxu0 %v340
        %v362 = vpop.f32.mrf.mxu0
        %v363 = vadd.f32 %v333, %v362
        %364 = vdwg.mxu0
        %v365 = vmax.f32 %v360, 0.0
        %v366 = vmax.f32 %v363, 0.0
        %s367 = scalar_lea.vmem %s277, 32 [#allocation5]
        %v368 = vld [vmem:[%s367] sm:$0xff]
        %v369 = vld [vmem:[%s367 + $0x8] sm:$0xff]
        %v370 = vld [vmem:[%s367 + $0x10] sm:$0xff]
        %v371 = vld [vmem:[%s367 + $0x18] sm:$0xff]
        %s372 = scalar_lea.vmem %s287, 1 [#allocation7]
        %v373 = vld [vmem:[%s372] sm:$0x1]
        %v375 = vperm.slane %v373, 0
        %v378 = vsel %vm335, %v365, 0
        %v381 = vsel %vm335, %v366, 0
        %383 = vmatpush.msra.mxu0 0.0
        %384 = vmatpush.msra.mxu0 0.0
        %385 = vmatpush.msra.mxu0 0.0
        %386 = vmatpush.msra.mxu0 0.0
        %387 = vmatpush.msra.mxu0 0.0
        %388 = vmatpush.msra.mxu0 0.0
        %389 = vmatpush.msra.mxu0 0.0
        %390 = vmatpush.msra.mxu0 0.0
        %391 = vmatpush.msra.mxu0 0.0
        %392 = vmatpush.msra.mxu0 0.0
        %393 = vmatpush.msra.mxu0 0.0
        %394 = vmatpush.msra.mxu0 0.0
        %395 = vmatpush.msra.mxu0 %v371
        %396 = vmatpush.msra.mxu0 %v370
        %397 = vmatpush.msra.mxu0 %v369
        %398 = vmatpush.msra.mxu0 %v368
        %399 = vmatmul.f32.gmra.mxu0 %v378
        %v400 = vpop.f32.mrf.mxu0
        %v401 = vadd.f32 %v375, %v400
        %402 = vmatmul.f32.gmra.mxu0 %v381
        %v403 = vpop.f32.mrf.mxu0
        %v404 = vadd.f32 %v375, %v403
        %405 = vdwg.mxu0
        %v406 = vmax.f32 %v401, 0.0
        %v407 = vmax.f32 %v404, 0.0
        %v408 = vsel %vm335, %v406, 0.0
        %409 = vadd.xlane.f32.xlu0 %v408
        %v410 = vpop.xlane.xlu0 %409
        %v411 = vsel %vm335, %v407, 0.0
        %412 = vadd.xlane.f32.xlu0 %v411
        %v413 = vpop.xlane.xlu0 %412
        %v414 = vrcp.pop 32.0
        %v415 = vmul.f32 32.0, %v414
        %v416 = vsub.f32 1.0, %v415
        %v417 = vmul.f32 %v414, %v416
        %v418 = vadd.f32 %v414, %v417
        %vm419 = vweird.f32 %v414
        %v420 = vsel %vm419, %v414, %v418
        %v421 = vmul.f32 %v410, %v420
        %v422 = vmul.f32 %v413, %v420
        %v423 = vsub.f32 %v406, %v421
        %v424 = vsub.f32 %v407, %v422
        %v425 = vmul.f32 %v423, %v423
        %v426 = vmul.f32 %v424, %v424
        %v427 = vsel %vm335, %v425, 0.0
        %428 = vadd.xlane.f32.xlu0 %v427
        %v429 = vpop.xlane.xlu0 %428
        %v430 = vsel %vm335, %v426, 0.0
        %431 = vadd.xlane.f32.xlu0 %v430
        %v432 = vpop.xlane.xlu0 %431
        %v433 = vmul.f32 %v429, %v420
        %v434 = vmul.f32 %v432, %v420
        %v435 = vadd.f32 %v433, 1e-05
        %v436 = vadd.f32 %v434, 1e-05
        %v437 = vrsqrt.pop %v435
        %v438 = vmul.f32 %v437, %v435
        %v439 = vmul.f32 %v438, %v437
        %v440 = vmul.f32 0.5, %v439
        %v441 = vsub.f32 1.5, %v440
        %v442 = vmul.f32 %v437, %v441
        %vm443 = vweird.f32 %v435
        %vm444 = vweird.f32 %v437
        %vm445 = vmor %vm443, %vm444
        %v446 = vsel %vm445, %v437, %v442
        %v447 = vrsqrt.pop %v436
        %v448 = vmul.f32 %v447, %v436
        %v449 = vmul.f32 %v448, %v447
        %v450 = vmul.f32 0.5, %v449
        %v451 = vsub.f32 1.5, %v450
        %v452 = vmul.f32 %v447, %v451
        %vm453 = vweird.f32 %v436
        %vm454 = vweird.f32 %v447
        %vm455 = vmor %vm453, %vm454
        %v456 = vsel %vm455, %v447, %v452
        %v457 = vmul.f32 %v423, %v446
        %v458 = vmul.f32 %v424, %v456
        %v459 = vld [vmem:[%s3] sm:$0x1]
        %v461 = vperm.slane %v459, 0
        %v463 = vmul.f32 %v457, %v461
        %v464 = vmul.f32 %v458, %v461
        %v465 = vld [vmem:[%s4] sm:$0x1]
        %v467 = vperm.slane %v465, 0
        %v469 = vadd.f32 %v463, %v467
        %v470 = vadd.f32 %v464, %v467
        %471 = vst.msk [vmem:[%s324] sm:$0xff] %vm335, %v469
        %472 = vst.msk [vmem:[%s324 + $0x8] sm:$0xff] %vm335, %v470
        %s473 = sand.u32 %s153, 1
        %s474 = scalar_lea.sflag [#allocation4], %s473
        %s475 = sand.u32 %s153, 1
        %s476 = smul.addr %s475, 16
        %s477 = scalar_lea.vmem [#allocation8], %s476
        // Predicated region
        $region53: #{tpu_custom_call.1} parent=39 // pred_check
          %p478 = pneg %p163
        $region54: #{tpu_custom_call.1} parent=39 // pred_check_branch
          %480 = sbr.rel (%p478) target = $region56
        $region55: #{tpu_custom_call.1} parent=39 // pred_region
          %482 = vsyncadd %s474, 0
          %s483 = smul.addr %s25, 2
          %s484 = smul.addr %s483, 8
          %s485 = scalar_lea.hbm %s5, %s484
          %s486 = sshll.u32 %s477, 4
          %s487 = int_to_ptr.vmem [resolvable:$true] %s486
          %s488 = sshll.u32 %s485, 4
          %s489 = int_to_ptr.hbm [resolvable:$true] %s488
          %494 = dma.vmem_to_hbm [thread:$0]  %s487, 256, %s489, %s474, 128, 128, 8
        $region56: #{tpu_custom_call.1} parent=39 // pred_fallthru
          _
      $region40: #{tpu_custom_call.1} parent=5 // pred_fallthru
        _
      %p495 = scmp.le.s32.totalorder 2, %s20
      // Predicated region
      $region57: #{tpu_custom_call.1} parent=5 // pred_check
        %p496 = pneg %p495
      $region58: #{tpu_custom_call.1} parent=5 // pred_check_branch
        %498 = sbr.rel (%p496) target = $region60
      $region59: #{tpu_custom_call.1} parent=5 // pred_region
        %s499 = ssub.s32 %s20, 2
        // Predicated region
        $region61: #{tpu_custom_call.1} parent=59 // pred_check
          %p500 = pneg %p169
        $region62: #{tpu_custom_call.1} parent=59 // pred_check_branch
          %502 = sbr.rel (%p500) target = $region64
        $region63: #{tpu_custom_call.1} parent=59 // pred_region
          %s503 = sand.u32 %s154, 1
          %s504 = scalar_lea.sflag [#allocation4], %s503
          %s505 = sand.u32 %s154, 1
          %s506 = smul.addr %s505, 16
          %s507 = scalar_lea.vmem [#allocation8], %s506
          %509 = dma.done %s504, 256
        $region64: #{tpu_custom_call.1} parent=59 // pred_fallthru
          _
      $region60: #{tpu_custom_call.1} parent=5 // pred_fallthru
        _
    $region6: #{tpu_custom_call.1} parent=1 // loop_footer
      %s24 = sadd.s32 1, %s20
    $region7: #{tpu_custom_call.1} parent=1 // loop_footer_branch
      %19 = sbr.rel target = $region3
    $region8: #{tpu_custom_call.1} parent=1 // loop_exit
      _
    %510 = vsyncpa [#allocation3], 1
    %s511 = scalar_lea.sflag [#allocation3], 1
    %512 = vsyncpa %s511, 1
    %513 = vsyncpa [#allocation6], 1
    %s514 = scalar_lea.sflag [#allocation6], 1
    %515 = vsyncpa %s514, 1
    %516 = vsyncpa [#allocation4], 1
    %s517 = scalar_lea.sflag [#allocation4], 1
    %518 = vsyncpa %s517, 1

</llo_original>
